<compile_context>
chip_gen: v5e
topology: v5e:2x2
jax: 0.10.0
libtpu: 0.0.40
codegen_flags: <defaults>
</compile_context>

<pallas_src>
import functools
import math

import jax
import jax.numpy as jnp
from jax import lax
from jax.experimental import pallas as pl
from jax.experimental.pallas import tpu as pltpu


def _round_up(a: int, b: int) -> int:
    return (a + b - 1) // b * b


def _gcn_kernel_single(adj_ref, x_ref, w_ref, b_ref, o_ref, *, act):
    """Single contraction step: one adjacency row-strip, full reduction.

    adj_ref: (tm, N)  streamed     x_ref: (N, Fin)  resident
    w_ref:  (Fin, Fp) resident     b_ref: (1, Fp)   resident
    o_ref:  (tm, Fp)
    No accumulator scratch and no pl.when branches.
    """
    mm_dtype = adj_ref.dtype
    support = jnp.dot(x_ref[...].astype(mm_dtype), w_ref[...].astype(mm_dtype),
                      preferred_element_type=mm_dtype)
    out = jnp.dot(adj_ref[...], support, preferred_element_type=jnp.float32)
    out = out + b_ref[...]
    if act is not None:
        out = act(out)
    o_ref[...] = out.astype(o_ref.dtype)


def _gcn_kernel_acc(adj_ref, x_ref, w_ref, b_ref, o_ref, acc_ref, *,
                    n_valid, tk, act):
    """Tiled contraction: f32 VMEM accumulator, bias/act applied once at the end."""
    k = pl.program_id(1)

    @pl.when(k == 0)
    def _():
        acc_ref[...] = jnp.zeros_like(acc_ref)

    adj = adj_ref[...]
    if n_valid is not None:
        # adj is consumed unpadded from HBM; the last contraction block is a
        # partial block whose out-of-range columns are undefined -> zero them.
        # (VALU cost, fully hidden under the adj DMA -- the kernel is mem-bound.)
        col = k * tk + lax.broadcasted_iota(jnp.int32, (1, tk), 1)
        adj = jnp.where(col < n_valid, adj, 0.0)

    mm_dtype = adj.dtype
    support = jnp.dot(x_ref[...].astype(mm_dtype), w_ref[...].astype(mm_dtype),
                      preferred_element_type=mm_dtype)
    acc_ref[...] += jnp.dot(adj, support, preferred_element_type=jnp.float32)

    @pl.when(k == pl.num_programs(1) - 1)
    def _():
        out = acc_ref[...] + b_ref[...]
        if act is not None:
            out = act(out)
        o_ref[...] = out.astype(o_ref.dtype)


@functools.partial(jax.jit, static_argnames=("act",))
def graph_convolution(x, adj, weight, bias, act=None):
    """Fused GCN forward: act(adj @ (x @ weight) + bias).

    x: [N, Fin], adj: [N, N], weight: [Fin, Fout], bias: [Fout].
    Operands are used in the dtype provided (pass pre-cast bf16 adj/x/weight
    for the bandwidth-optimized variant); accumulation is float32 and the
    output dtype is x.dtype.
    """
    N, Fin = x.shape
    Fout = weight.shape[1]
    out_dtype = x.dtype

    Fp = _round_up(Fout, 128)              # lane-dense output / MXU columns

    # Row tile: as large as useful, but keep >= 2 row blocks whenever N allows
    # so the "parallel" axis can shard across both TensorCores on v7x.
    if N <= 128:
        tm = N
    elif N < 512:
        tm = 128
    elif N < 1024:
        tm = 256
    else:
        tm = 512
    n_rows = pl.cdiv(N, tm)

    adj_bytes = adj.dtype.itemsize
    x_bytes = x.dtype.itemsize

    # Single contraction step if the double-buffered (tm, N) adjacency strip
    # plus the resident x stays comfortably inside VMEM (<< 48 MiB limit below;
    # v7x has 64 MiB physical, v5e/v6e have 128 MiB).
    single_k = (2 * tm * N * adj_bytes + N * Fin * x_bytes) <= 28 * 1024 * 1024

    # Weight / bias column padding is tiny (Fin x Fp, 1 x Fp); padded output
    # columns are exactly zero and are sliced off at the end.
    w_p = jnp.pad(weight, ((0, 0), (0, Fp - Fout)))
    b_p = jnp.pad(bias, (0, Fp - Fout)).astype(jnp.float32).reshape(1, Fp)

    flops = 2 * N * N * Fp + n_rows * 2 * N * Fin * Fp
    bytes_accessed = (N * N * adj_bytes + n_rows * N * Fin * x_bytes
                      + Fin * Fp * w_p.dtype.itemsize + 4 * Fp
                      + N * Fp * jnp.dtype(out_dtype).itemsize)
    cost = pl.CostEstimate(flops=flops, transcendentals=0,
                           bytes_accessed=bytes_accessed)
    cparams = pltpu.CompilerParams(
        dimension_semantics=("parallel",) if single_k else ("parallel", "arbitrary"),
        vmem_limit_bytes=48 * 1024 * 1024,
    )

    if single_k:
        out_p = pl.pallas_call(
            functools.partial(_gcn_kernel_single, act=act),
            out_shape=jax.ShapeDtypeStruct((N, Fp), out_dtype),
            grid_spec=pltpu.PrefetchScalarGridSpec(
                num_scalar_prefetch=0,
                grid=(n_rows,),
                in_specs=[
                    pl.BlockSpec((tm, N), lambda i: (i, 0)),     # adj row strip
                    pl.BlockSpec((N, Fin), lambda i: (0, 0)),    # x (resident)
                    pl.BlockSpec((Fin, Fp), lambda i: (0, 0)),   # weight (resident)
                    pl.BlockSpec((1, Fp), lambda i: (0, 0)),     # bias (resident)
                ],
                out_specs=pl.BlockSpec((tm, Fp), lambda i: (i, 0)),
            ),
            compiler_params=cparams,
            cost_estimate=cost,
        )(adj, x, w_p, b_p)
    else:
        # Large N: tile the contraction axis.  No divisibility constraint on N
        # (partial blocks + in-kernel mask), so no adjacency inflation.
        tk = min(2048, _round_up(N, 128))
        n_k = pl.cdiv(N, tk)
        n_valid = None if N % tk == 0 else N
        # Pad x rows with zeros up to the k-grid extent (cheap: ~N*Fin) so the
        # last x tile contains exact zeros rather than undefined values.
        x_p = jnp.pad(x, ((0, n_k * tk - N), (0, 0)))

        out_p = pl.pallas_call(
            functools.partial(_gcn_kernel_acc, n_valid=n_valid, tk=tk, act=act),
            out_shape=jax.ShapeDtypeStruct((N, Fp), out_dtype),
            grid_spec=pltpu.PrefetchScalarGridSpec(
                num_scalar_prefetch=0,
                grid=(n_rows, n_k),
                in_specs=[
                    # TODO(synk): pipeline_mode=pl.Buffered(3) on the adj stream
                    # if profiling shows exposed DMA (cheap in VMEM).
                    pl.BlockSpec((tm, tk), lambda i, k: (i, k)),    # adj tile
                    pl.BlockSpec((tk, Fin), lambda i, k: (k, 0)),   # x tile
                    pl.BlockSpec((Fin, Fp), lambda i, k: (0, 0)),   # weight
                    pl.BlockSpec((1, Fp), lambda i, k: (0, 0)),     # bias
                ],
                out_specs=pl.BlockSpec((tm, Fp), lambda i, k: (i, 0)),
                scratch_shapes=[pltpu.VMEM((tm, Fp), jnp.float32)],  # accumulator
            ),
            compiler_params=cparams,
            cost_estimate=cost,
        )(adj, x_p, w_p, b_p)

    return out_p[:, :Fout]


if __name__ == "__main__":
    # Small shapes consistent with the module: N nodes, in_features -> out_features.
    # N is a non-multiple of 128 to exercise partial blocks and a 2-row-block grid.
    N, IN_FEATURES, OUT_FEATURES = 200, 32, 16

    key = jax.random.PRNGKey(0)
    k_x, k_adj, k_w, k_b = jax.random.split(key, 4)

    # Deterministic parameter init mirroring reset_parameters():
    # uniform(-stdv, stdv) with stdv = 1/sqrt(out_features).
    stdv = 1.0 / math.sqrt(OUT_FEATURES)
    weight = jax.random.uniform(
        k_w, (IN_FEATURES, OUT_FEATURES), jnp.float32, minval=-stdv, maxval=stdv
    )
    bias = jax.random.uniform(
        k_b, (OUT_FEATURES,), jnp.float32, minval=-stdv, maxval=stdv
    )

    # Example inputs: node features and a symmetric row-normalized adjacency.
    x = jax.random.normal(k_x, (N, IN_FEATURES), jnp.float32)
    a_raw = (jax.random.uniform(k_adj, (N, N)) < 0.1).astype(jnp.float32)
    a_sym = jnp.maximum(a_raw, a_raw.T) + jnp.eye(N, dtype=jnp.float32)
    adj = a_sym / jnp.sum(a_sym, axis=1, keepdims=True)

    out = graph_convolution(x, adj, weight, bias)
    out = jax.block_until_ready(out)

    # Plain-XLA f32 reference, matching torch.mm(adj, torch.mm(x, W)) + bias.
    ref = adj @ (x @ weight) + bias[None, :]

    assert out.shape == (N, OUT_FEATURES)
    max_err = float(jnp.max(jnp.abs(out - ref)))
    assert jnp.allclose(out, ref, atol=2e-2, rtol=2e-2), max_err

    print("KERNEL_OK")
</pallas_src>

<mosaic_0001>
module attributes {stable_mosaic.version = 11 : i64} {
  func.func @_gcn_kernel_single(%arg0: i32, %arg1: memref<128x200xf32, #tpu.memory_space<vmem>>, %arg2: memref<200x32xf32, #tpu.memory_space<vmem>>, %arg3: memref<32x128xf32, #tpu.memory_space<vmem>>, %arg4: memref<1x128xf32, #tpu.memory_space<vmem>>, %arg5: memref<128x128xf32, #tpu.memory_space<vmem>>) attributes {dimension_semantics = [#tpu.dimension_semantics<parallel>], iteration_bounds = array<i64: 2>, scalar_prefetch = 0 : i64, scratch_operands = 0 : i64, tpu.core_type = #tpu.core_type<tc>, window_params = [{transform_indices = @transform_0, window_bounds = array<i64: 128, 200>}, {pipeline_mode = #tpu.pipeline_mode<synchronous>, transform_indices = @transform_1, window_bounds = array<i64: 200, 32>}, {pipeline_mode = #tpu.pipeline_mode<synchronous>, transform_indices = @transform_2, window_bounds = array<i64: 32, 128>}, {pipeline_mode = #tpu.pipeline_mode<synchronous>, transform_indices = @transform_3, window_bounds = array<i64: 1, 128>}, {transform_indices = @transform_4, window_bounds = array<i64: 128, 128>}]} {
    %c0 = arith.constant 0 : index
    %c0_0 = arith.constant 0 : index
    %0 = vector.load %arg2[%c0, %c0_0] : memref<200x32xf32, #tpu.memory_space<vmem>>, vector<200x32xf32>
    %c0_1 = arith.constant 0 : index
    %c0_2 = arith.constant 0 : index
    %1 = vector.load %arg3[%c0_1, %c0_2] : memref<32x128xf32, #tpu.memory_space<vmem>>, vector<32x128xf32>
    %cst = arith.constant dense<0.000000e+00> : vector<200x128xf32>
    %2 = tpu.matmul %0, %1, %cst {dimension_numbers = #tpu.dot_dimension_numbers<[1], [0], [0], [1], [0, 0, 1, 1], [], []>} : vector<200x32xf32>, vector<32x128xf32>, vector<200x128xf32> -> vector<200x128xf32>
    %c0_3 = arith.constant 0 : index
    %c0_4 = arith.constant 0 : index
    %3 = vector.load %arg1[%c0_3, %c0_4] : memref<128x200xf32, #tpu.memory_space<vmem>>, vector<128x200xf32>
    %cst_5 = arith.constant dense<0.000000e+00> : vector<128x128xf32>
    %4 = tpu.matmul %3, %2, %cst_5 {dimension_numbers = #tpu.dot_dimension_numbers<[1], [0], [0], [1], [0, 0, 1, 1], [], []>} : vector<128x200xf32>, vector<200x128xf32>, vector<128x128xf32> -> vector<128x128xf32>
    %c0_6 = arith.constant 0 : index
    %c0_7 = arith.constant 0 : index
    %5 = vector.load %arg4[%c0_6, %c0_7] : memref<1x128xf32, #tpu.memory_space<vmem>>, vector<1x128xf32>
    %6 = vector.broadcast %5 : vector<1x128xf32> to vector<128x128xf32>
    %7 = arith.addf %4, %6 : vector<128x128xf32>
    %c0_8 = arith.constant 0 : index
    %c0_9 = arith.constant 0 : index
    %8 = vector.load %arg5[%c0_8, %c0_9] : memref<128x128xf32, #tpu.memory_space<vmem>>, vector<128x128xf32>
    tpu.vector_store %arg5[%c0_8, %c0_9], %7 {strides = array<i32>} : memref<128x128xf32, #tpu.memory_space<vmem>>, vector<128x128xf32>,
    return
  }
  func.func @transform_0(%arg0: i32) -> (i32, i32) {
    %c0_i32 = arith.constant 0 : i32
    %c0_i32_0 = arith.constant 0 : i32
    return %arg0, %c0_i32 : i32, i32
  }
  func.func @transform_1(%arg0: i32) -> (i32, i32) {
    %c0_i32 = arith.constant 0 : i32
    %c0_i32_0 = arith.constant 0 : i32
    %c0_i32_1 = arith.constant 0 : i32
    return %c0_i32, %c0_i32_0 : i32, i32
  }
  func.func @transform_2(%arg0: i32) -> (i32, i32) {
    %c0_i32 = arith.constant 0 : i32
    %c0_i32_0 = arith.constant 0 : i32
    %c0_i32_1 = arith.constant 0 : i32
    return %c0_i32, %c0_i32_0 : i32, i32
  }
  func.func @transform_3(%arg0: i32) -> (i32, i32) {
    %c0_i32 = arith.constant 0 : i32
    %c0_i32_0 = arith.constant 0 : i32
    %c0_i32_1 = arith.constant 0 : i32
    return %c0_i32, %c0_i32_0 : i32, i32
  }
  func.func @transform_4(%arg0: i32) -> (i32, i32) {
    %c0_i32 = arith.constant 0 : i32
    %c0_i32_0 = arith.constant 0 : i32
    return %arg0, %c0_i32 : i32, i32
  }
}

</mosaic_0001>

<llo_original>
// kernel: graph_convolution.1
$region0: #{graph_convolution.1}
  #allocation0 [shape = 'u32[]', space=smem, size = 0x4, offset = 0x4, fixed_abs, tag = 'smem constant byte address 0x4 - core index']
  #allocation1 [shape = 'u32[72,128]{1,0:T(1,128)}', space=vmem, size = 0x9000, scoped, tag = 'internal scratch']
  %s0 = inlined_call_operand.hbm [shape: f32[200,200], index: 0, kind: input, shape index: {}]
  %s1 = inlined_call_operand.vmem [shape: f32[200,32], index: 1, kind: input, shape index: {}]
  %s2 = inlined_call_operand.vmem [shape: f32[32,128], index: 2, kind: input, shape index: {}]
  %s3 = inlined_call_operand.vmem [shape: f32[1,128], index: 3, kind: input, shape index: {}]
  %s4 = inlined_call_operand.vmem [shape: f32[200,128], index: 4, kind: output, shape index: {}]
  %s5 = sld [smem:[#allocation0]]
  $region101: #{graph_convolution.1} parent=0
    _
  %s7 = ssub.s32 1, %s5
  %s8 = scalar_select 0, %s7, %s5
  $region1: #{graph_convolution.1} parent=0
    #allocation2 [shape = 'u8[262144]{0}', space=vmem, size = 0x40000, scoped, tag = 'input window, operand 0']
    #allocation3 [shape = 's32[2]{0}', space=sflag, size = 0x8, scoped, tag = 'scoped memory for graph_convolution.1']
    #allocation4 [shape = 'u8[131072]{0}', space=vmem, size = 0x20000, scoped, tag = 'output window, operand 0']
    %9 = vsyncpa [#allocation3], 0
    %s10 = scalar_lea.sflag [#allocation3], 1
    %11 = vsyncpa %s10, 0
    loop: start=0, step=1, limit=4
    $region2: #{graph_convolution.1} parent=1 // loop_pre_header
      _
    $region3: #{graph_convolution.1} parent=1 // loop_header
      %s13 = sphi 0, %s17
      %p14 = scmp.ge.s32.totalorder %s13, 4
      %s23 = sphi 0, %s25
      %s26 = sphi 0, %s23
      %s27 = sphi 0, %s26
      %s43 = sphi 0, %s27
      %s47 = sphi 0, %s47
      %s49 = sphi 0, %s47
      %s50 = sphi 0, %s49
      %s64 = sphi 0, %s50
      %s68 = sphi 0, %s68
      %s70 = sphi 0, %s68
      %s71 = sphi 0, %s70
      %s85 = sphi 0, %s71
      %s89 = sphi 0, %s89
      %s91 = sphi 0, %s89
      %s92 = sphi 0, %s91
      %s106 = sphi 0, %s92
      %s112 = sphi 0, %s114
      %s115 = sphi 0, %s112
      %s116 = sphi 0, %s115
      %s132 = sphi 0, %s116
    $region4: #{graph_convolution.1} parent=1 // loop_header_branch
      %16 = sbr.rel (%p14) target = $region8
    $region5: #{graph_convolution.1} parent=1 // loop_body
      %s18 = ssub.s32 %s13, 1
      %s19 = ssub.s32 %s13, 2
      %s20 = sadd.s32 %s13, 1
      %s21 = ssub.s32 %s13, %s20
      %p22 = scmp.eq.s32.totalorder %s21, 0
      %s24 = sadd.s32 %s23, 1
      %s25 = scalar_select %p22, %s23, %s24
      %p28 = pneg %p22
      %p29 = scmp.eq.s32.totalorder %s13, 1
      %p30 = por %p28, %p29
      %p31 = scmp.ne.s32.totalorder %s23, %s26
      %p32 = scmp.eq.s32.totalorder %s13, 0
      %p33 = por %p31, %p32
      %p34 = scmp.ne.s32.totalorder %s23, %s26
      %p35 = scmp.eq.s32.totalorder %s18, 1
      %p36 = por %p34, %p35
      %p37 = scmp.ne.s32.totalorder %s26, %s27
      %p38 = scmp.eq.s32.totalorder %s18, 0
      %p39 = por %p37, %p38
      %p40 = scmp.ne.s32.totalorder %s26, %s27
      %p41 = scmp.eq.s32.totalorder %s19, 1
      %p42 = por %p40, %p41
      %p44 = scmp.ne.s32.totalorder %s27, %s43
      %p45 = scmp.eq.s32.totalorder %s19, 0
      %p46 = por %p44, %p45
      %s48 = sadd.s32 %s47, 1
      %p51 = scmp.eq.s32.totalorder %s13, 1
      %p52 = scmp.ne.s32.totalorder %s47, %s49
      %p53 = scmp.eq.s32.totalorder %s13, 0
      %p54 = por %p52, %p53
      %p55 = scmp.ne.s32.totalorder %s47, %s49
      %p56 = scmp.eq.s32.totalorder %s18, 1
      %p57 = por %p55, %p56
      %p58 = scmp.ne.s32.totalorder %s49, %s50
      %p59 = scmp.eq.s32.totalorder %s18, 0
      %p60 = por %p58, %p59
      %p61 = scmp.ne.s32.totalorder %s49, %s50
      %p62 = scmp.eq.s32.totalorder %s19, 1
      %p63 = por %p61, %p62
      %p65 = scmp.ne.s32.totalorder %s50, %s64
      %p66 = scmp.eq.s32.totalorder %s19, 0
      %p67 = por %p65, %p66
      %s69 = sadd.s32 %s68, 1
      %p72 = scmp.eq.s32.totalorder %s13, 1
      %p73 = scmp.ne.s32.totalorder %s68, %s70
      %p74 = scmp.eq.s32.totalorder %s13, 0
      %p75 = por %p73, %p74
      %p76 = scmp.ne.s32.totalorder %s68, %s70
      %p77 = scmp.eq.s32.totalorder %s18, 1
      %p78 = por %p76, %p77
      %p79 = scmp.ne.s32.totalorder %s70, %s71
      %p80 = scmp.eq.s32.totalorder %s18, 0
      %p81 = por %p79, %p80
      %p82 = scmp.ne.s32.totalorder %s70, %s71
      %p83 = scmp.eq.s32.totalorder %s19, 1
      %p84 = por %p82, %p83
      %p86 = scmp.ne.s32.totalorder %s71, %s85
      %p87 = scmp.eq.s32.totalorder %s19, 0
      %p88 = por %p86, %p87
      %s90 = sadd.s32 %s89, 1
      %p93 = scmp.eq.s32.totalorder %s13, 1
      %p94 = scmp.ne.s32.totalorder %s89, %s91
      %p95 = scmp.eq.s32.totalorder %s13, 0
      %p96 = por %p94, %p95
      %p97 = scmp.ne.s32.totalorder %s89, %s91
      %p98 = scmp.eq.s32.totalorder %s18, 1
      %p99 = por %p97, %p98
      %p100 = scmp.ne.s32.totalorder %s91, %s92
      %p101 = scmp.eq.s32.totalorder %s18, 0
      %p102 = por %p100, %p101
      %p103 = scmp.ne.s32.totalorder %s91, %s92
      %p104 = scmp.eq.s32.totalorder %s19, 1
      %p105 = por %p103, %p104
      %p107 = scmp.ne.s32.totalorder %s92, %s106
      %p108 = scmp.eq.s32.totalorder %s19, 0
      %p109 = por %p107, %p108
      %s110 = ssub.s32 %s13, %s20
      %p111 = scmp.eq.s32.totalorder %s110, 0
      %s113 = sadd.s32 %s112, 1
      %s114 = scalar_select %p111, %s112, %s113
      %p117 = pneg %p111
      %p118 = scmp.eq.s32.totalorder %s13, 1
      %p119 = por %p117, %p118
      %p120 = scmp.ne.s32.totalorder %s112, %s115
      %p121 = scmp.eq.s32.totalorder %s13, 0
      %p122 = por %p120, %p121
      %p123 = scmp.ne.s32.totalorder %s112, %s115
      %p124 = scmp.eq.s32.totalorder %s18, 1
      %p125 = por %p123, %p124
      %p126 = scmp.ne.s32.totalorder %s115, %s116
      %p127 = scmp.eq.s32.totalorder %s18, 0
      %p128 = por %p126, %p127
      %p129 = scmp.ne.s32.totalorder %s115, %s116
      %p130 = scmp.eq.s32.totalorder %s19, 1
      %p131 = por %p129, %p130
      %p133 = scmp.ne.s32.totalorder %s116, %s132
      %p134 = scmp.eq.s32.totalorder %s19, 0
      %p135 = por %p133, %p134
      %p136 = scmp.le.s32.totalorder 1, %s13
      %p137 = scmp.lt.s32.totalorder %s13, 3
      %p138 = pnand %p136, %p137
      %p139 = pneg %p138
      // Predicated region
      $region9: #{graph_convolution.1} parent=5 // pred_check
        _
      $region10: #{graph_convolution.1} parent=5 // pred_check_branch
        %141 = sbr.rel (%p138) target = $region12
      $region11: #{graph_convolution.1} parent=5 // pred_region
        %s142 = ssub.s32 %s13, 1
        // Predicated region
        $region13: #{graph_convolution.1} parent=11 // pred_check
          %p143 = pneg %p60
        $region14: #{graph_convolution.1} parent=11 // pred_check_branch
          %145 = sbr.rel (%p143) target = $region16
        $region15: #{graph_convolution.1} parent=11 // pred_region
          _
        $region16: #{graph_convolution.1} parent=11 // pred_fallthru
          _
        // Predicated region
        $region17: #{graph_convolution.1} parent=11 // pred_check
          %p146 = pneg %p81
        $region18: #{graph_convolution.1} parent=11 // pred_check_branch
          %148 = sbr.rel (%p146) target = $region20
        $region19: #{graph_convolution.1} parent=11 // pred_region
          _
        $region20: #{graph_convolution.1} parent=11 // pred_fallthru
          _
        // Predicated region
        $region21: #{graph_convolution.1} parent=11 // pred_check
          %p149 = pneg %p102
        $region22: #{graph_convolution.1} parent=11 // pred_check_branch
          %151 = sbr.rel (%p149) target = $region24
        $region23: #{graph_convolution.1} parent=11 // pred_region
          _
        $region24: #{graph_convolution.1} parent=11 // pred_fallthru
          _
      $region12: #{graph_convolution.1} parent=5 // pred_fallthru
        _
      %p152 = scmp.lt.s32.totalorder %s13, 2
      // Predicated region
      $region25: #{graph_convolution.1} parent=5 // pred_check
        %p153 = pneg %p152
      $region26: #{graph_convolution.1} parent=5 // pred_check_branch
        %155 = sbr.rel (%p153) target = $region28
      $region27: #{graph_convolution.1} parent=5 // pred_region
        // Predicated region
        $region29: #{graph_convolution.1} parent=27 // pred_check
          %p156 = pneg %p33
        $region30: #{graph_convolution.1} parent=27 // pred_check_branch
          %158 = sbr.rel (%p156) target = $region32
        $region31: #{graph_convolution.1} parent=27 // pred_region
          %s159 = sand.u32 %s23, 1
          %s160 = scalar_lea.sflag [#allocation3], %s159
          %s161 = sand.u32 %s23, 1
          %s162 = smul.addr %s161, 256
          %s163 = scalar_lea.vmem [#allocation2], %s162
          %s164 = smul.u32 16, %s13
          %s165 = ssub.s32 25, %s164
          %p166 = scmp.lt.s32.totalorder %s165, 16
          %s167 = scalar_select %p166, %s165, 16
          %s168 = smul.u32 8, %s167
          %s169 = smul.u32 %s168, 2
          %s170 = ssub.s32 256, %s169
          %s171 = sshll.u32 %s170, 4
          %172 = vsyncadd %s160, %s171
          %p173 = scmp.ne.s32.totalorder 0, %s169
          %s174 = smul.addr %s164, 2
          %s175 = smul.addr %s174, 8
          %s176 = scalar_lea.hbm %s0, %s175
          %s177 = smul.u32 16, %s167
          %s178 = sshll.u32 %s176, 4
          %s179 = int_to_ptr.hbm [resolvable:$true] %s178
          %s180 = sshll.u32 %s163, 4
          %s181 = int_to_ptr.vmem [resolvable:$true] %s180
          %s182 = sshll.u32 %s177, 4
          %186 = dma.hbm_to_vmem [thread:$0]  (%p173), %s179, %s182, %s181, %s160, 256, 256, 16
        $region32: #{graph_convolution.1} parent=27 // pred_fallthru
          _
      $region28: #{graph_convolution.1} parent=5 // pred_fallthru
        _
      %p187 = scmp.le.s32.totalorder 1, %s13
      %p188 = scmp.lt.s32.totalorder %s13, 3
      %p189 = pnand %p187, %p188
      %p190 = pneg %p189
      // Predicated region
      $region33: #{graph_convolution.1} parent=5 // pred_check
        _
      $region34: #{graph_convolution.1} parent=5 // pred_check_branch
        %192 = sbr.rel (%p189) target = $region36
      $region35: #{graph_convolution.1} parent=5 // pred_region
        %s193 = ssub.s32 %s13, 1
        %s194 = sand.u32 %s26, 1
        %s195 = scalar_lea.sflag [#allocation3], %s194
        %s196 = sand.u32 %s26, 1
        %s197 = smul.addr %s196, 256
        %s198 = scalar_lea.vmem [#allocation2], %s197
        // Predicated region
        $region37: #{graph_convolution.1} parent=35 // pred_check
          %p199 = pneg %p39
        $region38: #{graph_convolution.1} parent=35 // pred_check_branch
          %201 = sbr.rel (%p199) target = $region40
        $region39: #{graph_convolution.1} parent=35 // pred_region
          %203 = dma.done %s195, 4096
        $region40: #{graph_convolution.1} parent=35 // pred_fallthru
          _
        %s204 = sand.u32 %s26, 1
        %s205 = scalar_lea.sflag [#allocation3], %s204
        %s206 = sand.u32 %s26, 1
        %s207 = smul.addr %s206, 256
        %s208 = scalar_lea.vmem [#allocation2], %s207
        %p209 = pneg %p39
        %p210 = pneg %p36
        %p211 = pneg %p60
        %p212 = pneg %p57
        %p213 = pneg %p81
        %p214 = pneg %p78
        %p215 = pneg %p102
        %p216 = pneg %p99
        %p217 = pneg %p128
        %p218 = pneg %p125
        %s219 = sand.u32 %s115, 1
        %s220 = sand.u32 %s115, 1
        %s221 = smul.addr %s220, 128
        %s222 = scalar_lea.vmem [#allocation4], %s221
        %s223 = smul.u32 16, %s18
        %s224 = ssub.s32 25, %s223
        %p225 = scmp.lt.s32.totalorder %s224, 16
        %s226 = scalar_select %p225, %s224, 16
        %s227 = smul.u32 8, %s226
        %s228 = smul.u32 %s227, 2
        %s229 = smul.u32 16, %s18
        %s230 = ssub.s32 25, %s229
        %p231 = scmp.lt.s32.totalorder %s230, 16
        %s232 = scalar_select %p231, %s230, 16
        %s233 = smul.u32 8, %s232
        %v234 = vld [vmem:[%s1] sm:$0xff]
        %v235 = vld [vmem:[%s1 + $0x8] sm:$0xff]
        %v236 = vld [vmem:[%s1 + $0x10] sm:$0xff]
        %v237 = vld [vmem:[%s1 + $0x18] sm:$0xff]
        %v238 = vld [vmem:[%s1 + $0x20] sm:$0xff]
        %v239 = vld [vmem:[%s1 + $0x28] sm:$0xff]
        %v240 = vld [vmem:[%s1 + $0x30] sm:$0xff]
        %v241 = vld [vmem:[%s1 + $0x38] sm:$0xff]
        %v242 = vld [vmem:[%s1 + $0x40] sm:$0xff]
        %v243 = vld [vmem:[%s1 + $0x48] sm:$0xff]
        %v244 = vld [vmem:[%s1 + $0x50] sm:$0xff]
        %v245 = vld [vmem:[%s1 + $0x58] sm:$0xff]
        %v246 = vld [vmem:[%s1 + $0x60] sm:$0xff]
        %v247 = vld [vmem:[%s1 + $0x68] sm:$0xff]
        %v248 = vld [vmem:[%s1 + $0x70] sm:$0xff]
        %v249 = vld [vmem:[%s1 + $0x78] sm:$0xff]
        %v250 = vld [vmem:[%s1 + $0x80] sm:$0xff]
        %v251 = vld [vmem:[%s1 + $0x88] sm:$0xff]
        %v252 = vld [vmem:[%s1 + $0x90] sm:$0xff]
        %v253 = vld [vmem:[%s1 + $0x98] sm:$0xff]
        %v254 = vld [vmem:[%s1 + $0xa0] sm:$0xff]
        %v255 = vld [vmem:[%s1 + $0xa8] sm:$0xff]
        %v256 = vld [vmem:[%s1 + $0xb0] sm:$0xff]
        %v257 = vld [vmem:[%s1 + $0xb8] sm:$0xff]
        %v258 = vld [vmem:[%s1 + $0xc0] sm:$0xff]
        %v259 = vld [vmem:[%s2] sm:$0xff]
        %v260 = vld [vmem:[%s2 + $0x8] sm:$0xff]
        %v261 = vld [vmem:[%s2 + $0x10] sm:$0xff]
        %v262 = vld [vmem:[%s2 + $0x18] sm:$0xff]
        %vm263 = vcmask 261120
        %v265 = vsel %vm263, %v234, 0
        %v268 = vsel %vm263, %v235, 0
        %v271 = vsel %vm263, %v236, 0
        %v274 = vsel %vm263, %v237, 0
        %v277 = vsel %vm263, %v238, 0
        %v280 = vsel %vm263, %v239, 0
        %v283 = vsel %vm263, %v240, 0
        %v286 = vsel %vm263, %v241, 0
        %v289 = vsel %vm263, %v242, 0
        %v292 = vsel %vm263, %v243, 0
        %v295 = vsel %vm263, %v244, 0
        %v298 = vsel %vm263, %v245, 0
        %v301 = vsel %vm263, %v246, 0
        %v304 = vsel %vm263, %v247, 0
        %v307 = vsel %vm263, %v248, 0
        %v310 = vsel %vm263, %v249, 0
        %v313 = vsel %vm263, %v250, 0
        %v316 = vsel %vm263, %v251, 0
        %v319 = vsel %vm263, %v252, 0
        %v322 = vsel %vm263, %v253, 0
        %v325 = vsel %vm263, %v254, 0
        %v328 = vsel %vm263, %v255, 0
        %v331 = vsel %vm263, %v256, 0
        %v334 = vsel %vm263, %v257, 0
        %v337 = vsel %vm263, %v258, 0
        %339 = vmatpush.msra.mxu0 0.0
        %340 = vmatpush.msra.mxu0 0.0
        %341 = vmatpush.msra.mxu0 0.0
        %342 = vmatpush.msra.mxu0 0.0
        %343 = vmatpush.msra.mxu0 0.0
        %344 = vmatpush.msra.mxu0 0.0
        %345 = vmatpush.msra.mxu0 0.0
        %346 = vmatpush.msra.mxu0 0.0
        %347 = vmatpush.msra.mxu0 0.0
        %348 = vmatpush.msra.mxu0 0.0
        %349 = vmatpush.msra.mxu0 0.0
        %350 = vmatpush.msra.mxu0 0.0
        %351 = vmatpush.msra.mxu0 %v262
        %352 = vmatpush.msra.mxu0 %v261
        %353 = vmatpush.msra.mxu0 %v260
        %354 = vmatpush.msra.mxu0 %v259
        %355 = vmatmul.f32.gmra.mxu0 %v265
        %v356 = vpop.f32.mrf.mxu0
        %v357 = vadd.f32 0.0, %v356
        %358 = vmatmul.f32.gmra.mxu0 %v268
        %v359 = vpop.f32.mrf.mxu0
        %v360 = vadd.f32 0.0, %v359
        %361 = vmatmul.f32.gmra.mxu0 %v271
        %v362 = vpop.f32.mrf.mxu0
        %v363 = vadd.f32 0.0, %v362
        %364 = vmatmul.f32.gmra.mxu0 %v274
        %v365 = vpop.f32.mrf.mxu0
        %v366 = vadd.f32 0.0, %v365
        %367 = vmatmul.f32.gmra.mxu0 %v277
        %v368 = vpop.f32.mrf.mxu0
        %v369 = vadd.f32 0.0, %v368
        %370 = vmatmul.f32.gmra.mxu0 %v280
        %v371 = vpop.f32.mrf.mxu0
        %v372 = vadd.f32 0.0, %v371
        %373 = vmatmul.f32.gmra.mxu0 %v283
        %v374 = vpop.f32.mrf.mxu0
        %v375 = vadd.f32 0.0, %v374
        %376 = vmatmul.f32.gmra.mxu0 %v286
        %v377 = vpop.f32.mrf.mxu0
        %v378 = vadd.f32 0.0, %v377
        %379 = vmatmul.f32.gmra.mxu0 %v289
        %v380 = vpop.f32.mrf.mxu0
        %v381 = vadd.f32 0.0, %v380
        %382 = vmatmul.f32.gmra.mxu0 %v292
        %v383 = vpop.f32.mrf.mxu0
        %v384 = vadd.f32 0.0, %v383
        %385 = vmatmul.f32.gmra.mxu0 %v295
        %v386 = vpop.f32.mrf.mxu0
        %v387 = vadd.f32 0.0, %v386
        %388 = vmatmul.f32.gmra.mxu0 %v298
        %v389 = vpop.f32.mrf.mxu0
        %v390 = vadd.f32 0.0, %v389
        %391 = vmatmul.f32.gmra.mxu0 %v301
        %v392 = vpop.f32.mrf.mxu0
        %v393 = vadd.f32 0.0, %v392
        %394 = vmatmul.f32.gmra.mxu0 %v304
        %v395 = vpop.f32.mrf.mxu0
        %v396 = vadd.f32 0.0, %v395
        %397 = vmatmul.f32.gmra.mxu0 %v307
        %v398 = vpop.f32.mrf.mxu0
        %v399 = vadd.f32 0.0, %v398
        %400 = vmatmul.f32.gmra.mxu0 %v310
        %v401 = vpop.f32.mrf.mxu0
        %v402 = vadd.f32 0.0, %v401
        %403 = vmatmul.f32.gmra.mxu0 %v313
        %v404 = vpop.f32.mrf.mxu0
        %v405 = vadd.f32 0.0, %v404
        %406 = vmatmul.f32.gmra.mxu0 %v316
        %v407 = vpop.f32.mrf.mxu0
        %v408 = vadd.f32 0.0, %v407
        %409 = vmatmul.f32.gmra.mxu0 %v319
        %v410 = vpop.f32.mrf.mxu0
        %v411 = vadd.f32 0.0, %v410
        %412 = vmatmul.f32.gmra.mxu0 %v322
        %v413 = vpop.f32.mrf.mxu0
        %v414 = vadd.f32 0.0, %v413
        %415 = vmatmul.f32.gmra.mxu0 %v325
        %v416 = vpop.f32.mrf.mxu0
        %v417 = vadd.f32 0.0, %v416
        %418 = vmatmul.f32.gmra.mxu0 %v328
        %v419 = vpop.f32.mrf.mxu0
        %v420 = vadd.f32 0.0, %v419
        %421 = vmatmul.f32.gmra.mxu0 %v331
        %v422 = vpop.f32.mrf.mxu0
        %v423 = vadd.f32 0.0, %v422
        %424 = vmatmul.f32.gmra.mxu0 %v334
        %v425 = vpop.f32.mrf.mxu0
        %v426 = vadd.f32 0.0, %v425
        %427 = vmatmul.f32.gmra.mxu0 %v337
        %v428 = vpop.f32.mrf.mxu0
        %v429 = vadd.f32 0.0, %v428
        %430 = vdwg.mxu0
        %v431 = vld [vmem:[%s198] sm:$0xff]
        %v432 = vld [vmem:[%s198 + $0x8] sm:$0xff]
        %v433 = vld [vmem:[%s198 + $0x10] sm:$0xff]
        %v434 = vld [vmem:[%s198 + $0x18] sm:$0xff]
        %v435 = vld [vmem:[%s198 + $0x20] sm:$0xff]
        %v436 = vld [vmem:[%s198 + $0x28] sm:$0xff]
        %v437 = vld [vmem:[%s198 + $0x30] sm:$0xff]
        %v438 = vld [vmem:[%s198 + $0x38] sm:$0xff]
        %v439 = vld [vmem:[%s198 + $0x40] sm:$0xff]
        %v440 = vld [vmem:[%s198 + $0x48] sm:$0xff]
        %v441 = vld [vmem:[%s198 + $0x50] sm:$0xff]
        %v442 = vld [vmem:[%s198 + $0x58] sm:$0xff]
        %v443 = vld [vmem:[%s198 + $0x60] sm:$0xff]
        %v444 = vld [vmem:[%s198 + $0x68] sm:$0xff]
        %v445 = vld [vmem:[%s198 + $0x70] sm:$0xff]
        %v446 = vld [vmem:[%s198 + $0x78] sm:$0xff]
        %v447 = vld [vmem:[%s198 + $0x80] sm:$0xff]
        %v448 = vld [vmem:[%s198 + $0x88] sm:$0xff]
        %v449 = vld [vmem:[%s198 + $0x90] sm:$0xff]
        %v450 = vld [vmem:[%s198 + $0x98] sm:$0xff]
        %v451 = vld [vmem:[%s198 + $0xa0] sm:$0xff]
        %v452 = vld [vmem:[%s198 + $0xa8] sm:$0xff]
        %v453 = vld [vmem:[%s198 + $0xb0] sm:$0xff]
        %v454 = vld [vmem:[%s198 + $0xb8] sm:$0xff]
        %v455 = vld [vmem:[%s198 + $0xc0] sm:$0xff]
        %v456 = vld [vmem:[%s198 + $0xc8] sm:$0xff]
        %v457 = vld [vmem:[%s198 + $0xd0] sm:$0xff]
        %v458 = vld [vmem:[%s198 + $0xd8] sm:$0xff]
        %v459 = vld [vmem:[%s198 + $0xe0] sm:$0xff]
        %v460 = vld [vmem:[%s198 + $0xe8] sm:$0xff]
        %v461 = vld [vmem:[%s198 + $0xf0] sm:$0xff]
        %v462 = vld [vmem:[%s198 + $0xf8] sm:$0xff]
        %v463 = vld [vmem:[%s3] sm:$0x1]
        %v465 = vperm.slane %v463, 0
        %vm467 = vcmask 588800
        %v469 = vsel %vm467, %v432, 0
        %v472 = vsel %vm467, %v434, 0
        %v475 = vsel %vm467, %v436, 0
        %v478 = vsel %vm467, %v438, 0
        %v481 = vsel %vm467, %v440, 0
        %v484 = vsel %vm467, %v442, 0
        %v487 = vsel %vm467, %v444, 0
        %v490 = vsel %vm467, %v446, 0
        %v493 = vsel %vm467, %v448, 0
        %v496 = vsel %vm467, %v450, 0
        %v499 = vsel %vm467, %v452, 0
        %v502 = vsel %vm467, %v454, 0
        %v505 = vsel %vm467, %v456, 0
        %v508 = vsel %vm467, %v458, 0
        %v511 = vsel %vm467, %v460, 0
        %v514 = vsel %vm467, %v462, 0
        %516 = vmatpush.msra.mxu0 %v402
        %517 = vmatpush.msra.mxu0 %v399
        %518 = vmatpush.msra.mxu0 %v396
        %519 = vmatpush.msra.mxu0 %v393
        %520 = vmatpush.msra.mxu0 %v390
        %521 = vmatpush.msra.mxu0 %v387
        %522 = vmatpush.msra.mxu0 %v384
        %523 = vmatpush.msra.mxu0 %v381
        %524 = vmatpush.msra.mxu0 %v378
        %525 = vmatpush.msra.mxu0 %v375
        %526 = vmatpush.msra.mxu0 %v372
        %527 = vmatpush.msra.mxu0 %v369
        %528 = vmatpush.msra.mxu0 %v366
        %529 = vmatpush.msra.mxu0 %v363
        %530 = vmatpush.msra.mxu0 %v360
        %531 = vmatpush.msra.mxu0 %v357
        %532 = vmatmul.f32.gmra.mxu0 %v431
        %v533 = vpop.f32.mrf.mxu0
        %v534 = vadd.f32 %v465, %v533
        %535 = vmatmul.f32.gmra.mxu0 %v433
        %v536 = vpop.f32.mrf.mxu0
        %v537 = vadd.f32 %v465, %v536
        %538 = vmatmul.f32.gmra.mxu0 %v435
        %v539 = vpop.f32.mrf.mxu0
        %v540 = vadd.f32 %v465, %v539
        %541 = vmatmul.f32.gmra.mxu0 %v437
        %v542 = vpop.f32.mrf.mxu0
        %v543 = vadd.f32 %v465, %v542
        %544 = vmatmul.f32.gmra.mxu0 %v439
        %v545 = vpop.f32.mrf.mxu0
        %v546 = vadd.f32 %v465, %v545
        %547 = vmatmul.f32.gmra.mxu0 %v441
        %v548 = vpop.f32.mrf.mxu0
        %v549 = vadd.f32 %v465, %v548
        %550 = vmatmul.f32.gmra.mxu0 %v443
        %v551 = vpop.f32.mrf.mxu0
        %v552 = vadd.f32 %v465, %v551
        %553 = vmatmul.f32.gmra.mxu0 %v445
        %v554 = vpop.f32.mrf.mxu0
        %v555 = vadd.f32 %v465, %v554
        %556 = vmatmul.f32.gmra.mxu0 %v447
        %v557 = vpop.f32.mrf.mxu0
        %v558 = vadd.f32 %v465, %v557
        %559 = vmatmul.f32.gmra.mxu0 %v449
        %v560 = vpop.f32.mrf.mxu0
        %v561 = vadd.f32 %v465, %v560
        %562 = vmatmul.f32.gmra.mxu0 %v451
        %v563 = vpop.f32.mrf.mxu0
        %v564 = vadd.f32 %v465, %v563
        %565 = vmatmul.f32.gmra.mxu0 %v453
        %v566 = vpop.f32.mrf.mxu0
        %v567 = vadd.f32 %v465, %v566
        %568 = vmatmul.f32.gmra.mxu0 %v455
        %v569 = vpop.f32.mrf.mxu0
        %v570 = vadd.f32 %v465, %v569
        %571 = vmatmul.f32.gmra.mxu0 %v457
        %v572 = vpop.f32.mrf.mxu0
        %v573 = vadd.f32 %v465, %v572
        %574 = vmatmul.f32.gmra.mxu0 %v459
        %v575 = vpop.f32.mrf.mxu0
        %v576 = vadd.f32 %v465, %v575
        %577 = vmatmul.f32.gmra.mxu0 %v461
        %v578 = vpop.f32.mrf.mxu0
        %v579 = vadd.f32 %v465, %v578
        %580 = vdwg.mxu0
        %581 = vmatpush.msra.mxu0 0.0
        %582 = vmatpush.msra.mxu0 0.0
        %583 = vmatpush.msra.mxu0 0.0
        %584 = vmatpush.msra.mxu0 0.0
        %585 = vmatpush.msra.mxu0 0.0
        %586 = vmatpush.msra.mxu0 0.0
        %587 = vmatpush.msra.mxu0 0.0
        %588 = vmatpush.msra.mxu0 %v429
        %589 = vmatpush.msra.mxu0 %v426
        %590 = vmatpush.msra.mxu0 %v423
        %591 = vmatpush.msra.mxu0 %v420
        %592 = vmatpush.msra.mxu0 %v417
        %593 = vmatpush.msra.mxu0 %v414
        %594 = vmatpush.msra.mxu0 %v411
        %595 = vmatpush.msra.mxu0 %v408
        %596 = vmatpush.msra.mxu0 %v405
        %597 = vmatmul.f32.gmra.mxu0 %v469
        %v598 = vpop.f32.mrf.mxu0
        %v599 = vadd.f32 %v534, %v598
        %600 = vmatmul.f32.gmra.mxu0 %v472
        %v601 = vpop.f32.mrf.mxu0
        %v602 = vadd.f32 %v537, %v601
        %603 = vmatmul.f32.gmra.mxu0 %v475
        %v604 = vpop.f32.mrf.mxu0
        %v605 = vadd.f32 %v540, %v604
        %606 = vmatmul.f32.gmra.mxu0 %v478
        %v607 = vpop.f32.mrf.mxu0
        %v608 = vadd.f32 %v543, %v607
        %609 = vmatmul.f32.gmra.mxu0 %v481
        %v610 = vpop.f32.mrf.mxu0
        %v611 = vadd.f32 %v546, %v610
        %612 = vmatmul.f32.gmra.mxu0 %v484
        %v613 = vpop.f32.mrf.mxu0
        %v614 = vadd.f32 %v549, %v613
        %615 = vmatmul.f32.gmra.mxu0 %v487
        %v616 = vpop.f32.mrf.mxu0
        %v617 = vadd.f32 %v552, %v616
        %618 = vmatmul.f32.gmra.mxu0 %v490
        %v619 = vpop.f32.mrf.mxu0
        %v620 = vadd.f32 %v555, %v619
        %621 = vmatmul.f32.gmra.mxu0 %v493
        %v622 = vpop.f32.mrf.mxu0
        %v623 = vadd.f32 %v558, %v622
        %624 = vmatmul.f32.gmra.mxu0 %v496
        %v625 = vpop.f32.mrf.mxu0
        %v626 = vadd.f32 %v561, %v625
        %627 = vmatmul.f32.gmra.mxu0 %v499
        %v628 = vpop.f32.mrf.mxu0
        %v629 = vadd.f32 %v564, %v628
        %630 = vmatmul.f32.gmra.mxu0 %v502
        %v631 = vpop.f32.mrf.mxu0
        %v632 = vadd.f32 %v567, %v631
        %633 = vmatmul.f32.gmra.mxu0 %v505
        %v634 = vpop.f32.mrf.mxu0
        %v635 = vadd.f32 %v570, %v634
        %636 = vmatmul.f32.gmra.mxu0 %v508
        %v637 = vpop.f32.mrf.mxu0
        %v638 = vadd.f32 %v573, %v637
        %639 = vmatmul.f32.gmra.mxu0 %v511
        %v640 = vpop.f32.mrf.mxu0
        %v641 = vadd.f32 %v576, %v640
        %642 = vmatmul.f32.gmra.mxu0 %v514
        %v643 = vpop.f32.mrf.mxu0
        %v644 = vadd.f32 %v579, %v643
        %645 = vdwg.mxu0
        %646 = vst [vmem:[%s222] sm:$0xff] %v599
        %647 = vst [vmem:[%s222 + $0x8] sm:$0xff] %v602
        %648 = vst [vmem:[%s222 + $0x10] sm:$0xff] %v605
        %649 = vst [vmem:[%s222 + $0x18] sm:$0xff] %v608
        %650 = vst [vmem:[%s222 + $0x20] sm:$0xff] %v611
        %651 = vst [vmem:[%s222 + $0x28] sm:$0xff] %v614
        %652 = vst [vmem:[%s222 + $0x30] sm:$0xff] %v617
        %653 = vst [vmem:[%s222 + $0x38] sm:$0xff] %v620
        %654 = vst [vmem:[%s222 + $0x40] sm:$0xff] %v623
        %655 = vst [vmem:[%s222 + $0x48] sm:$0xff] %v626
        %656 = vst [vmem:[%s222 + $0x50] sm:$0xff] %v629
        %657 = vst [vmem:[%s222 + $0x58] sm:$0xff] %v632
        %658 = vst [vmem:[%s222 + $0x60] sm:$0xff] %v635
        %659 = vst [vmem:[%s222 + $0x68] sm:$0xff] %v638
        %660 = vst [vmem:[%s222 + $0x70] sm:$0xff] %v641
        %661 = vst [vmem:[%s222 + $0x78] sm:$0xff] %v644
        %s662 = sand.u32 %s115, 1
        %s663 = sand.u32 %s115, 1
        %s664 = smul.addr %s663, 128
        %s665 = scalar_lea.vmem [#allocation4], %s664
        // Predicated region
        $region41: #{graph_convolution.1} parent=35 // pred_check
          %p666 = pneg %p125
        $region42: #{graph_convolution.1} parent=35 // pred_check_branch
          %668 = sbr.rel (%p666) target = $region44
        $region43: #{graph_convolution.1} parent=35 // pred_region
          %s669 = smul.u32 16, %s18
          %s670 = ssub.s32 25, %s669
          %p671 = scmp.lt.s32.totalorder %s670, 16
          %s672 = scalar_select %p671, %s670, 16
          %s673 = smul.u32 8, %s672
          %p674 = scmp.ne.s32.totalorder 0, %s673
          %s675 = smul.addr %s669, 8
          %s676 = scalar_lea.vmem %s4, %s675
          // Predicated region
          $region45: #{graph_convolution.1} parent=43 // pred_check
            %p677 = pneg %p674
          $region46: #{graph_convolution.1} parent=43 // pred_check_branch
            %679 = sbr.rel (%p677) target = $region48
          $region47: #{graph_convolution.1} parent=43 // pred_region
            // Predicated region
            $region49: #{graph_convolution.1} parent=47 // pred_check
              _
            $region50: #{graph_convolution.1} parent=47 // pred_check_branch
              %681 = sbr.rel (0) target = $region52
            $region51: #{graph_convolution.1} parent=47 // pred_region
              // Predicated region
              $region71: #{graph_convolution.1} parent=51 // pred_check
                _
              $region72: #{graph_convolution.1} parent=51 // pred_check_branch
                %761 = sbr.rel (0) target = $region74
              $region73: #{graph_convolution.1} parent=51 // pred_region
                %s762 = sshrl.u32 %s672, 4
                // While loop
                $region75: #{graph_convolution.1} parent=73 // loop_pre_header
                  _
                $region76: #{graph_convolution.1} parent=73 // loop_header
                  %s764 = sphi 0, %s766
                  %p765 = scmp.ge.s32.totalorder %s764, %s762
                  %s769 = sphi 0, %s806
                  %s770 = sphi %s665, %s809
                  %s771 = sphi %s676, %s810
                $region77: #{graph_convolution.1} parent=73 // loop_header_branch
                  %768 = sbr.rel (%p765) target = $region81
                $region78: #{graph_convolution.1} parent=73 // loop_body
                  %v772 = vld [vmem:[%s770] sm:$0xff]
                  %773 = vst [vmem:[%s771] sm:$0xff] %v772
                  %v774 = vld [vmem:[%s770 + $0x8] sm:$0xff]
                  %775 = vst [vmem:[%s771 + $0x8] sm:$0xff] %v774
                  %v776 = vld [vmem:[%s770 + $0x10] sm:$0xff]
                  %777 = vst [vmem:[%s771 + $0x10] sm:$0xff] %v776
                  %v778 = vld [vmem:[%s770 + $0x18] sm:$0xff]
                  %779 = vst [vmem:[%s771 + $0x18] sm:$0xff] %v778
                  %v780 = vld [vmem:[%s770 + $0x20] sm:$0xff]
                  %781 = vst [vmem:[%s771 + $0x20] sm:$0xff] %v780
                  %v782 = vld [vmem:[%s770 + $0x28] sm:$0xff]
                  %783 = vst [vmem:[%s771 + $0x28] sm:$0xff] %v782
                  %v784 = vld [vmem:[%s770 + $0x30] sm:$0xff]
                  %785 = vst [vmem:[%s771 + $0x30] sm:$0xff] %v784
                  %v786 = vld [vmem:[%s770 + $0x38] sm:$0xff]
                  %787 = vst [vmem:[%s771 + $0x38] sm:$0xff] %v786
                  %v788 = vld [vmem:[%s770 + $0x40] sm:$0xff]
                  %789 = vst [vmem:[%s771 + $0x40] sm:$0xff] %v788
                  %v790 = vld [vmem:[%s770 + $0x48] sm:$0xff]
                  %791 = vst [vmem:[%s771 + $0x48] sm:$0xff] %v790
                  %v792 = vld [vmem:[%s770 + $0x50] sm:$0xff]
                  %793 = vst [vmem:[%s771 + $0x50] sm:$0xff] %v792
                  %v794 = vld [vmem:[%s770 + $0x58] sm:$0xff]
                  %795 = vst [vmem:[%s771 + $0x58] sm:$0xff] %v794
                  %v796 = vld [vmem:[%s770 + $0x60] sm:$0xff]
                  %797 = vst [vmem:[%s771 + $0x60] sm:$0xff] %v796
                  %v798 = vld [vmem:[%s770 + $0x68] sm:$0xff]
                  %799 = vst [vmem:[%s771 + $0x68] sm:$0xff] %v798
                  %v800 = vld [vmem:[%s770 + $0x70] sm:$0xff]
                  %801 = vst [vmem:[%s771 + $0x70] sm:$0xff] %v800
                  %v802 = vld [vmem:[%s770 + $0x78] sm:$0xff]
                  %803 = vst [vmem:[%s771 + $0x78] sm:$0xff] %v802
                  %s804 = sadd.s32 1, %s769
                  %p805 = scmp.ge.s32.totalorder %s804, %s762
                  %s806 = scalar_select %p805, 0, %s804
                  %s807 = smul.u32 %s806, 128
                  %s808 = smul.u32 %s806, 128
                  %s809 = scalar_lea.vmem %s665, %s807 [#allocation4]
                  %s810 = scalar_lea.vmem %s676, %s808
                $region79: #{graph_convolution.1} parent=73 // loop_footer
                  %s766 = sadd.s32 %s764, 1
                $region80: #{graph_convolution.1} parent=73 // loop_footer_branch
                  %763 = sbr.rel target = $region76
                $region81: #{graph_convolution.1} parent=73 // loop_exit
                  _
                %s811 = sshrl.u32 %s672, 4
                %s812 = sand.u32 %s672, 15
                %s813 = smul.u32 %s811, 16
                %s814 = smul.u32 8, %s813
                %s815 = scalar_lea.vmem %s665, %s814 [#allocation4]
                %s816 = smul.u32 8, %s813
                %s817 = scalar_lea.vmem %s676, %s816
                // While loop
                $region82: #{graph_convolution.1} parent=73 // loop_pre_header
                  _
                $region83: #{graph_convolution.1} parent=73 // loop_header
                  %s819 = sphi 0, %s821
                  %p820 = scmp.ge.s32.totalorder %s819, %s812
                  %s824 = sphi 0, %s831
                  %s825 = sphi %s815, %s834
                  %s826 = sphi %s817, %s835
                $region84: #{graph_convolution.1} parent=73 // loop_header_branch
                  %823 = sbr.rel (%p820) target = $region88
                $region85: #{graph_convolution.1} parent=73 // loop_body
                  %v827 = vld [vmem:[%s825] sm:$0xff]
                  %828 = vst [vmem:[%s826] sm:$0xff] %v827
                  %s829 = sadd.s32 1, %s824
                  %p830 = scmp.ge.s32.totalorder %s829, %s812
                  %s831 = scalar_select %p830, 0, %s829
                  %s832 = smul.u32 %s831, 8
                  %s833 = smul.u32 %s831, 8
                  %s834 = scalar_lea.vmem %s815, %s832 [#allocation4]
                  %s835 = scalar_lea.vmem %s817, %s833
                $region86: #{graph_convolution.1} parent=73 // loop_footer
                  %s821 = sadd.s32 %s819, 1
                $region87: #{graph_convolution.1} parent=73 // loop_footer_branch
                  %818 = sbr.rel target = $region83
                $region88: #{graph_convolution.1} parent=73 // loop_exit
                  _
              $region74: #{graph_convolution.1} parent=51 // pred_fallthru
                _
              // Predicated region
              $region89: #{graph_convolution.1} parent=51 // pred_check
                _
              $region90: #{graph_convolution.1} parent=51 // pred_check_branch
                %837 = sbr.rel target = $region92
              $region91: #{graph_convolution.1} parent=51 // pred_region
                _
              $region92: #{graph_convolution.1} parent=51 // pred_fallthru
                _
            $region52: #{graph_convolution.1} parent=47 // pred_fallthru
              _
            // Predicated region
            $region53: #{graph_convolution.1} parent=47 // pred_check
              _
            $region54: #{graph_convolution.1} parent=47 // pred_check_branch
              %683 = sbr.rel target = $region56
            $region55: #{graph_convolution.1} parent=47 // pred_region
              %s685 = ssub.s32 256, 1
              %s686 = sshrl.u32 %s672, 4
              // While loop
              $region57: #{graph_convolution.1} parent=55 // loop_pre_header
                _
              $region58: #{graph_convolution.1} parent=55 // loop_header
                %s688 = sphi 0, %s690
                %p689 = scmp.ge.s32.totalorder %s688, %s686
                %s693 = sphi 0, %s730
                %s694 = sphi %s665, %s733
                %s695 = sphi %s676, %s734
              $region59: #{graph_convolution.1} parent=55 // loop_header_branch
                %692 = sbr.rel (%p689) target = $region63
              $region60: #{graph_convolution.1} parent=55 // loop_body
                %v696 = vld [vmem:[%s694] sm:%s685]
                %697 = vst [vmem:[%s695] sm:%s685] %v696
                %v698 = vld [vmem:[%s694 + $0x8] sm:%s685]
                %699 = vst [vmem:[%s695 + $0x8] sm:%s685] %v698
                %v700 = vld [vmem:[%s694 + $0x10] sm:%s685]
                %701 = vst [vmem:[%s695 + $0x10] sm:%s685] %v700
                %v702 = vld [vmem:[%s694 + $0x18] sm:%s685]
                %703 = vst [vmem:[%s695 + $0x18] sm:%s685] %v702
                %v704 = vld [vmem:[%s694 + $0x20] sm:%s685]
                %705 = vst [vmem:[%s695 + $0x20] sm:%s685] %v704
                %v706 = vld [vmem:[%s694 + $0x28] sm:%s685]
                %707 = vst [vmem:[%s695 + $0x28] sm:%s685] %v706
                %v708 = vld [vmem:[%s694 + $0x30] sm:%s685]
                %709 = vst [vmem:[%s695 + $0x30] sm:%s685] %v708
                %v710 = vld [vmem:[%s694 + $0x38] sm:%s685]
                %711 = vst [vmem:[%s695 + $0x38] sm:%s685] %v710
                %v712 = vld [vmem:[%s694 + $0x40] sm:%s685]
                %713 = vst [vmem:[%s695 + $0x40] sm:%s685] %v712
                %v714 = vld [vmem:[%s694 + $0x48] sm:%s685]
                %715 = vst [vmem:[%s695 + $0x48] sm:%s685] %v714
                %v716 = vld [vmem:[%s694 + $0x50] sm:%s685]
                %717 = vst [vmem:[%s695 + $0x50] sm:%s685] %v716
                %v718 = vld [vmem:[%s694 + $0x58] sm:%s685]
                %719 = vst [vmem:[%s695 + $0x58] sm:%s685] %v718
                %v720 = vld [vmem:[%s694 + $0x60] sm:%s685]
                %721 = vst [vmem:[%s695 + $0x60] sm:%s685] %v720
                %v722 = vld [vmem:[%s694 + $0x68] sm:%s685]
                %723 = vst [vmem:[%s695 + $0x68] sm:%s685] %v722
                %v724 = vld [vmem:[%s694 + $0x70] sm:%s685]
                %725 = vst [vmem:[%s695 + $0x70] sm:%s685] %v724
                %v726 = vld [vmem:[%s694 + $0x78] sm:%s685]
                %727 = vst [vmem:[%s695 + $0x78] sm:%s685] %v726
                %s728 = sadd.s32 1, %s693
                %p729 = scmp.ge.s32.totalorder %s728, %s686
                %s730 = scalar_select %p729, 0, %s728
                %s731 = smul.u32 %s730, 128
                %s732 = smul.u32 %s730, 128
                %s733 = scalar_lea.vmem %s665, %s731 [#allocation4]
                %s734 = scalar_lea.vmem %s676, %s732
              $region61: #{graph_convolution.1} parent=55 // loop_footer
                %s690 = sadd.s32 %s688, 1
              $region62: #{graph_convolution.1} parent=55 // loop_footer_branch
                %687 = sbr.rel target = $region58
              $region63: #{graph_convolution.1} parent=55 // loop_exit
                _
              %s735 = sshrl.u32 %s672, 4
              %s736 = sand.u32 %s672, 15
              %s737 = smul.u32 %s735, 16
              %s738 = smul.u32 8, %s737
              %s739 = scalar_lea.vmem %s665, %s738 [#allocation4]
              %s740 = smul.u32 8, %s737
              %s741 = scalar_lea.vmem %s676, %s740
              // While loop
              $region64: #{graph_convolution.1} parent=55 // loop_pre_header
                _
              $region65: #{graph_convolution.1} parent=55 // loop_header
                %s743 = sphi 0, %s745
                %p744 = scmp.ge.s32.totalorder %s743, %s736
                %s748 = sphi 0, %s755
                %s749 = sphi %s739, %s758
                %s750 = sphi %s741, %s759
              $region66: #{graph_convolution.1} parent=55 // loop_header_branch
                %747 = sbr.rel (%p744) target = $region70
              $region67: #{graph_convolution.1} parent=55 // loop_body
                %v751 = vld [vmem:[%s749] sm:%s685]
                %752 = vst [vmem:[%s750] sm:%s685] %v751
                %s753 = sadd.s32 1, %s748
                %p754 = scmp.ge.s32.totalorder %s753, %s736
                %s755 = scalar_select %p754, 0, %s753
                %s756 = smul.u32 %s755, 8
                %s757 = smul.u32 %s755, 8
                %s758 = scalar_lea.vmem %s739, %s756 [#allocation4]
                %s759 = scalar_lea.vmem %s741, %s757
              $region68: #{graph_convolution.1} parent=55 // loop_footer
                %s745 = sadd.s32 %s743, 1
              $region69: #{graph_convolution.1} parent=55 // loop_footer_branch
                %742 = sbr.rel target = $region65
              $region70: #{graph_convolution.1} parent=55 // loop_exit
                _
            $region56: #{graph_convolution.1} parent=47 // pred_fallthru
              _
          $region48: #{graph_convolution.1} parent=43 // pred_fallthru
            _
          %838 = vnop
        $region44: #{graph_convolution.1} parent=35 // pred_fallthru
          _
      $region36: #{graph_convolution.1} parent=5 // pred_fallthru
        _
      %p839 = scmp.le.s32.totalorder 2, %s13
      // Predicated region
      $region93: #{graph_convolution.1} parent=5 // pred_check
        %p840 = pneg %p839
      $region94: #{graph_convolution.1} parent=5 // pred_check_branch
        %842 = sbr.rel (%p840) target = $region96
      $region95: #{graph_convolution.1} parent=5 // pred_region
        %s843 = ssub.s32 %s13, 2
        // Predicated region
        $region97: #{graph_convolution.1} parent=95 // pred_check
          %p844 = pneg %p131
        $region98: #{graph_convolution.1} parent=95 // pred_check_branch
          %846 = sbr.rel (%p844) target = $region100
        $region99: #{graph_convolution.1} parent=95 // pred_region
          %s847 = sand.u32 %s116, 1
          %s848 = sand.u32 %s116, 1
          %s849 = smul.addr %s848, 128
          %s850 = scalar_lea.vmem [#allocation4], %s849
        $region100: #{graph_convolution.1} parent=95 // pred_fallthru
          _
      $region96: #{graph_convolution.1} parent=5 // pred_fallthru
        _
    $region6: #{graph_convolution.1} parent=1 // loop_footer
      %s17 = sadd.s32 1, %s13
    $region7: #{graph_convolution.1} parent=1 // loop_footer_branch
      %12 = sbr.rel target = $region3
    $region8: #{graph_convolution.1} parent=1 // loop_exit
      _
    %851 = vsyncpa [#allocation3], 1
    %s852 = scalar_lea.sflag [#allocation3], 1
    %853 = vsyncpa %s852, 1

</llo_original>
